<compile_context>
chip_gen: v5e
topology: v5e:2x2
jax: 0.10.0
libtpu: 0.0.40
codegen_flags: <defaults>
</compile_context>

<pallas_src>
import jax
import jax.numpy as jnp
from jax.experimental import pallas as pl
from jax.experimental.pallas import tpu as pltpu


_GELU_C1 = 0.7978845608028654          # sqrt(2/pi)
_GELU_C2 = _GELU_C1 * 0.044715         # folded: sqrt(2/pi) * 0.044715


def _round_up(x, m):
    return (x + m - 1) // m * m


def _bias_gelu(h):
    # tanh-approx GeLU on (x@W1 + b1); constants pre-folded so the polynomial
    # is h * (c1 + c2*h^2) (one fewer (tm,tf) multiply). tanh -> EUP slot.
    h2 = h * h
    return 0.5 * h * (1.0 + jnp.tanh(h * (_GELU_C1 + _GELU_C2 * h2)))


def _mlp_kernel_f32out(x_ref, w1_ref, b1_ref, w2_ref, o_ref):
    # f32 output path: accumulate directly into the resident output block
    # (saves the tm*Hp*4 scratch and the final full-tile copy).
    k = pl.program_id(1)

    @pl.when(k == 0)
    def _():
        o_ref[...] = jnp.zeros_like(o_ref)

    h = jnp.dot(x_ref[...], w1_ref[...], preferred_element_type=jnp.float32)
    g = _bias_gelu(h + b1_ref[...])
    o_ref[...] += jnp.dot(g.astype(w2_ref.dtype), w2_ref[...],
                          preferred_element_type=jnp.float32)


def _mlp_kernel_acc(x_ref, w1_ref, b1_ref, w2_ref, o_ref, acc_ref):
    # Narrow-output path (e.g. bf16): f32 accumulator scratch, cast at the end.
    k = pl.program_id(1)

    @pl.when(k == 0)
    def _():
        acc_ref[...] = jnp.zeros_like(acc_ref)

    h = jnp.dot(x_ref[...], w1_ref[...], preferred_element_type=jnp.float32)
    g = _bias_gelu(h + b1_ref[...])
    acc_ref[...] += jnp.dot(g.astype(w2_ref.dtype), w2_ref[...],
                            preferred_element_type=jnp.float32)

    @pl.when(k == pl.num_programs(1) - 1)
    def _():
        o_ref[...] = acc_ref[...].astype(o_ref.dtype)


def _vmem_capacity_bytes():
    """Physical per-core VMEM; conservative fallback if the query fails."""
    try:
        info = pltpu.get_tpu_info()
        cap = getattr(info, "vmem_capacity_bytes", None)
        if cap:
            return int(cap)
    except Exception:
        pass
    return 64 << 20  # v7x-sized conservative default


def _vmem_usage_bytes(tm, tf, Hp, in_bytes, out_bytes, use_acc, io_bufs):
    """Itemized VMEM working set for the chosen tiling."""
    usage = 2 * Hp * tf * in_bytes            # W1 chunk, double-buffered
    usage += 2 * tf * Hp * in_bytes           # W2 chunk, double-buffered
    usage += 2 * 8 * tf * 4                   # b1 chunk (f32, sublane-padded)
    usage += io_bufs * tm * Hp * in_bytes     # x tile (k-invariant)
    usage += io_bufs * tm * Hp * out_bytes    # out tile (k-invariant)
    if use_acc:
        usage += tm * Hp * 4                  # f32 accumulator scratch
    usage += 3 * tm * tf * 4                  # h / gelu f32 temporaries
    return usage


def parallel_mlp(hidden_states, w1, b1, w2, b2, *, tm=None, tf=None,
                 compute_dtype=None):
    """Fused ParallelMLP forward.

    hidden_states: [S, B, H] (Megatron "sbh" layout). w1: [H, F], b1: [F],
    w2: [F, H], b2: [H].  Returns (output [S, B, H], output_bias [H]) exactly
    like ParallelMLP.forward (second bias is returned, not added:
    skip_bias_add=True on dense_4h_to_h).
    """
    S, B, H = hidden_states.shape
    Fdim = w1.shape[1]
    assert w1.shape == (H, Fdim) and b1.shape == (Fdim,)
    assert w2.shape == (Fdim, H) and b2.shape == (H,)

    out_dtype = jnp.dtype(hidden_states.dtype)
    cdt = jnp.dtype(compute_dtype) if compute_dtype is not None else out_dtype
    in_bytes = cdt.itemsize
    out_bytes = out_dtype.itemsize
    use_acc = out_dtype != jnp.dtype(jnp.float32)

    M = S * B
    Hp = _round_up(H, 128)

    # ---- per-generation tile derivation ------------------------------------
    vmem_cap = _vmem_capacity_bytes()
    vmem_budget = int(vmem_cap * 0.85)
    large_vmem = vmem_cap >= (96 << 20)   # v5e/v6e: 128 MiB; v7x: 64 MiB

    # tm = HBM weight-reuse knob; make it as large as VMEM allows.  tf only
    # needs to keep the MXU fed, so it is the first thing shrunk under
    # pressure (smaller-VMEM chips default to 512 as per the v7x roofline).
    tm_req = int(tm) if tm is not None else (1024 if large_vmem else 512)
    tf_req = int(tf) if tf is not None else (1024 if large_vmem else 512)

    tm_eff = _round_up(max(16, min(tm_req, _round_up(M, 16))), 16)
    tf_eff = _round_up(max(128, min(tf_req, _round_up(Fdim, 128))), 128)

    io_bufs = 2
    # Shrink-to-fit order: tf first (preserves weight reuse), then
    # single-buffer the k-invariant x/out blocks, then tm.
    while _vmem_usage_bytes(tm_eff, tf_eff, Hp, in_bytes, out_bytes,
                            use_acc, io_bufs) > vmem_budget:
        if tf_eff > 256:
            tf_eff = _round_up(max(256, tf_eff // 2), 128)
        elif io_bufs == 2:
            io_bufs = 1
        elif tm_eff > 128:
            tm_eff = _round_up(max(128, tm_eff // 2), 16)
        else:
            break

    Mp = _round_up(M, tm_eff)
    Fp = _round_up(Fdim, tf_eff)

    # ---- wrapper-side cast + zero padding (exact through matmul + gelu) ----
    x_flat = hidden_states.reshape(M, H).astype(cdt)
    x_pad = jnp.pad(x_flat, ((0, Mp - M), (0, Hp - H)))
    w1_pad = jnp.pad(w1.astype(cdt), ((0, Hp - H), (0, Fp - Fdim)))
    b1_pad = jnp.pad(b1.astype(jnp.float32), ((0, Fp - Fdim),)).reshape(1, Fp)
    w2_pad = jnp.pad(w2.astype(cdt), ((0, Fp - Fdim), (0, Hp - H)))
    # TODO(synk): if xprof shows the (Hp, tf) W1 strided DMA exposed, pre-
    # transpose W1 to (Fp, Hp) in the wrapper and contract on the last dims.

    # ---- specs --------------------------------------------------------------
    # x/out block indices are invariant across the inner F axis; under VMEM
    # pressure they are single-buffered (exposed DMA only once per M tile).
    if io_bufs == 1:
        x_spec = pl.BlockSpec((tm_eff, Hp), lambda i, k: (i, 0),
                              pipeline_mode=pl.Buffered(1))
        out_spec = pl.BlockSpec((tm_eff, Hp), lambda i, k: (i, 0),
                                pipeline_mode=pl.Buffered(1))
    else:
        x_spec = pl.BlockSpec((tm_eff, Hp), lambda i, k: (i, 0))
        out_spec = pl.BlockSpec((tm_eff, Hp), lambda i, k: (i, 0))

    if use_acc:
        kernel = _mlp_kernel_acc
        scratch_shapes = [pltpu.VMEM((tm_eff, Hp), jnp.float32)]
    else:
        kernel = _mlp_kernel_f32out
        scratch_shapes = []

    usage = _vmem_usage_bytes(tm_eff, tf_eff, Hp, in_bytes, out_bytes,
                              use_acc, io_bufs)
    # Accurate limit: itemized working set + headroom, never above ~90% of the
    # chip's physical VMEM (the old 100 MiB cap exceeded v7x's 64 MiB).
    vmem_limit = int(min(max(usage + (8 << 20), 16 << 20),
                         int(vmem_cap * 0.9)))

    n_m_tiles = Mp // tm_eff
    cost = pl.CostEstimate(
        flops=4 * Mp * Hp * Fp,                    # two matmuls
        transcendentals=Mp * Fp,                   # one tanh per intermediate
        bytes_accessed=(Mp * Hp * in_bytes         # x read
                        + Mp * Hp * out_bytes      # out write
                        + n_m_tiles * (Hp * Fp + Fp * Hp) * in_bytes  # W1+W2
                        + n_m_tiles * Fp * 4),     # b1, re-streamed per M tile
    )

    out_pad = pl.pallas_call(
        kernel,
        out_shape=jax.ShapeDtypeStruct((Mp, Hp), out_dtype),
        grid_spec=pltpu.PrefetchScalarGridSpec(
            num_scalar_prefetch=0,
            grid=(Mp // tm_eff, Fp // tf_eff),
            in_specs=[
                x_spec,                                           # x tile
                pl.BlockSpec((Hp, tf_eff), lambda i, k: (0, k)),  # W1 chunk
                pl.BlockSpec((1, tf_eff), lambda i, k: (0, k)),   # b1 chunk
                pl.BlockSpec((tf_eff, Hp), lambda i, k: (k, 0)),  # W2 chunk
            ],
            out_specs=out_spec,
            scratch_shapes=scratch_shapes,
        ),
        compiler_params=pltpu.CompilerParams(
            dimension_semantics=("parallel", "arbitrary"),
            vmem_limit_bytes=vmem_limit),
        cost_estimate=cost,
    )(x_pad, w1_pad, b1_pad, w2_pad)

    output = out_pad[:M, :H].reshape(S, B, H)
    # skip_bias_add=True on dense_4h_to_h: bias is returned, not applied.
    # TODO(synk): tensor-model-parallel all-reduce of RowParallelLinear is not
    # modeled (single partition assumed).
    # TODO(synk): for decode-like shapes with a single M tile on 2-TC chips
    # (v7x), a third grid axis over output-H tiles would keep both cores busy.
    return output, b2


def _reference(hidden_states, w1, b1, w2, b2):
    x = hidden_states.astype(jnp.float32)
    h = jnp.einsum("sbh,hf->sbf", x, w1.astype(jnp.float32)) + b1.astype(jnp.float32)
    g = 0.5 * h * (1.0 + jnp.tanh(_GELU_C1 * h * (1.0 + 0.044715 * h * h)))
    out = jnp.einsum("sbf,fh->sbh", g, w2.astype(jnp.float32))
    return out.astype(hidden_states.dtype), b2


if __name__ == "__main__":
    # Small shapes implied by the module: hidden_size=32, ff_dim=4*32=128,
    # seq=8, batch=2 (Megatron [s, b, h] layout).
    S, B, H = 8, 2, 32
    FF = 4 * H

    key = jax.random.PRNGKey(0)
    kx, k1, kb1, k2, kb2 = jax.random.split(key, 5)

    x = jax.random.normal(kx, (S, B, H), dtype=jnp.float32)
    w1 = jax.random.normal(k1, (H, FF), dtype=jnp.float32) * 0.02
    b1 = jax.random.normal(kb1, (FF,), dtype=jnp.float32) * 0.02
    w2 = jax.random.normal(k2, (FF, H), dtype=jnp.float32) * 0.02
    b2 = jax.random.normal(kb2, (H,), dtype=jnp.float32) * 0.02

    ref_out, ref_bias = _reference(x, w1, b1, w2, b2)

    # f32 path: accumulates directly into the output block.
    out, out_bias = parallel_mlp(x, w1, b1, w2, b2)
    out = jax.block_until_ready(out)
    out_bias = jax.block_until_ready(out_bias)
    assert out.shape == (S, B, H) and out_bias.shape == (H,)
    assert jnp.allclose(out, ref_out, atol=1e-4, rtol=1e-4)
    assert jnp.allclose(out_bias, ref_bias)

    # bf16 path: MXU operands stay bf16 (fast path), f32 accumulation inside.
    out_bf, bias_bf = parallel_mlp(
        x.astype(jnp.bfloat16), w1.astype(jnp.bfloat16), b1,
        w2.astype(jnp.bfloat16), b2.astype(jnp.bfloat16))
    out_bf = jax.block_until_ready(out_bf)
    assert out_bf.dtype == jnp.bfloat16 and bias_bf.shape == (H,)
    assert jnp.allclose(out_bf.astype(jnp.float32), ref_out, atol=2e-2, rtol=5e-2)

    print("KERNEL_OK")
</pallas_src>

<mosaic_0001>
module attributes {stable_mosaic.version = 11 : i64} {
  func.func @_mlp_kernel_f32out(%arg0: i32, %arg1: i32, %arg2: memref<16x128xf32, #tpu.memory_space<vmem>>, %arg3: memref<128x128xf32, #tpu.memory_space<vmem>>, %arg4: memref<1x128xf32, #tpu.memory_space<vmem>>, %arg5: memref<128x128xf32, #tpu.memory_space<vmem>>, %arg6: memref<16x128xf32, #tpu.memory_space<vmem>>) attributes {dimension_semantics = [#tpu.dimension_semantics<parallel>, #tpu.dimension_semantics<arbitrary>], iteration_bounds = array<i64: 1, 1>, scalar_prefetch = 0 : i64, scratch_operands = 0 : i64, tpu.core_type = #tpu.core_type<tc>, window_params = [{transform_indices = @transform_0, window_bounds = array<i64: 16, 128>}, {transform_indices = @transform_1, window_bounds = array<i64: 128, 128>}, {transform_indices = @transform_2, window_bounds = array<i64: 1, 128>}, {transform_indices = @transform_3, window_bounds = array<i64: 128, 128>}, {transform_indices = @transform_4, window_bounds = array<i64: 16, 128>}]} {
    %c0_i32 = arith.constant 0 : i32
    %0 = arith.cmpi eq, %arg1, %c0_i32 : i32
    %1 = arith.extui %0 : i1 to i32
    %c0_i32_0 = arith.constant 0 : i32
    %2 = arith.cmpi ne, %1, %c0_i32_0 : i32
    scf.if %2 {
      %cst_17 = arith.constant 0.000000e+00 : f32
      %26 = vector.broadcast %cst_17 : f32 to vector<16x128xf32>
      %c0_18 = arith.constant 0 : index
      %c0_19 = arith.constant 0 : index
      %27 = vector.load %arg6[%c0_18, %c0_19] : memref<16x128xf32, #tpu.memory_space<vmem>>, vector<16x128xf32>
      tpu.vector_store %arg6[%c0_18, %c0_19], %26 {strides = array<i32>} : memref<16x128xf32, #tpu.memory_space<vmem>>, vector<16x128xf32>,
    } else {
    }
    %c0 = arith.constant 0 : index
    %c0_1 = arith.constant 0 : index
    %3 = vector.load %arg2[%c0, %c0_1] : memref<16x128xf32, #tpu.memory_space<vmem>>, vector<16x128xf32>
    %c0_2 = arith.constant 0 : index
    %c0_3 = arith.constant 0 : index
    %4 = vector.load %arg3[%c0_2, %c0_3] : memref<128x128xf32, #tpu.memory_space<vmem>>, vector<128x128xf32>
    %cst = arith.constant dense<0.000000e+00> : vector<16x128xf32>
    %5 = tpu.matmul %3, %4, %cst {dimension_numbers = #tpu.dot_dimension_numbers<[1], [0], [0], [1], [0, 0, 1, 1], [], []>} : vector<16x128xf32>, vector<128x128xf32>, vector<16x128xf32> -> vector<16x128xf32>
    %c0_4 = arith.constant 0 : index
    %c0_5 = arith.constant 0 : index
    %6 = vector.load %arg4[%c0_4, %c0_5] : memref<1x128xf32, #tpu.memory_space<vmem>>, vector<1x128xf32>
    %7 = vector.broadcast %6 : vector<1x128xf32> to vector<16x128xf32>
    %8 = arith.addf %5, %7 : vector<16x128xf32>
    %9 = arith.mulf %8, %8 : vector<16x128xf32>
    %cst_6 = arith.constant 5.000000e-01 : f32
    %10 = vector.broadcast %cst_6 : f32 to vector<16x128xf32>
    %11 = arith.mulf %10, %8 : vector<16x128xf32>
    %cst_7 = arith.constant 0.0356774069 : f32
    %12 = vector.broadcast %cst_7 : f32 to vector<16x128xf32>
    %13 = arith.mulf %12, %9 : vector<16x128xf32>
    %cst_8 = arith.constant 0.797884583 : f32
    %14 = vector.broadcast %cst_8 : f32 to vector<16x128xf32>
    %15 = arith.addf %14, %13 : vector<16x128xf32>
    %16 = arith.mulf %8, %15 : vector<16x128xf32>
    %17 = math.tanh %16 : vector<16x128xf32>
    %cst_9 = arith.constant 1.000000e+00 : f32
    %18 = vector.broadcast %cst_9 : f32 to vector<16x128xf32>
    %19 = arith.addf %18, %17 : vector<16x128xf32>
    %20 = arith.mulf %11, %19 : vector<16x128xf32>
    %c0_10 = arith.constant 0 : index
    %c0_11 = arith.constant 0 : index
    %21 = vector.load %arg6[%c0_10, %c0_11] : memref<16x128xf32, #tpu.memory_space<vmem>>, vector<16x128xf32>
    %c0_12 = arith.constant 0 : index
    %c0_13 = arith.constant 0 : index
    %22 = vector.load %arg5[%c0_12, %c0_13] : memref<128x128xf32, #tpu.memory_space<vmem>>, vector<128x128xf32>
    %cst_14 = arith.constant dense<0.000000e+00> : vector<16x128xf32>
    %23 = tpu.matmul %20, %22, %cst_14 {dimension_numbers = #tpu.dot_dimension_numbers<[1], [0], [0], [1], [0, 0, 1, 1], [], []>} : vector<16x128xf32>, vector<128x128xf32>, vector<16x128xf32> -> vector<16x128xf32>
    %24 = arith.addf %21, %23 : vector<16x128xf32>
    %c0_15 = arith.constant 0 : index
    %c0_16 = arith.constant 0 : index
    %25 = vector.load %arg6[%c0_15, %c0_16] : memref<16x128xf32, #tpu.memory_space<vmem>>, vector<16x128xf32>
    tpu.vector_store %arg6[%c0_15, %c0_16], %24 {strides = array<i32>} : memref<16x128xf32, #tpu.memory_space<vmem>>, vector<16x128xf32>,
    return
  }
  func.func @transform_0(%arg0: i32, %arg1: i32) -> (i32, i32) {
    %c0_i32 = arith.constant 0 : i32
    %c0_i32_0 = arith.constant 0 : i32
    return %arg0, %c0_i32 : i32, i32
  }
  func.func @transform_1(%arg0: i32, %arg1: i32) -> (i32, i32) {
    %c0_i32 = arith.constant 0 : i32
    %c0_i32_0 = arith.constant 0 : i32
    return %c0_i32, %arg1 : i32, i32
  }
  func.func @transform_2(%arg0: i32, %arg1: i32) -> (i32, i32) {
    %c0_i32 = arith.constant 0 : i32
    %c0_i32_0 = arith.constant 0 : i32
    return %c0_i32, %arg1 : i32, i32
  }
  func.func @transform_3(%arg0: i32, %arg1: i32) -> (i32, i32) {
    %c0_i32 = arith.constant 0 : i32
    %c0_i32_0 = arith.constant 0 : i32
    return %arg1, %c0_i32 : i32, i32
  }
  func.func @transform_4(%arg0: i32, %arg1: i32) -> (i32, i32) {
    %c0_i32 = arith.constant 0 : i32
    %c0_i32_0 = arith.constant 0 : i32
    return %arg0, %c0_i32 : i32, i32
  }
}

</mosaic_0001>

<llo_original>
// kernel: tpu_custom_call.1
$region0: #{tpu_custom_call.1}
  #allocation0 [shape = 'u32[]', space=smem, size = 0x4, offset = 0x4, fixed_abs, tag = 'smem constant byte address 0x4 - core index']
  #allocation1 [shape = 'u32[72,128]{1,0:T(1,128)}', space=vmem, size = 0x9000, scoped, tag = 'internal scratch']
  %s0 = inlined_call_operand.hbm [shape: f32[16,128], index: 0, kind: input, shape index: {}]
  %s1 = inlined_call_operand.hbm [shape: f32[128,128], index: 1, kind: input, shape index: {}]
  %s2 = inlined_call_operand.vmem [shape: f32[1,128], index: 2, kind: input, shape index: {}]
  %s3 = inlined_call_operand.hbm [shape: f32[128,128], index: 3, kind: input, shape index: {}]
  %s4 = inlined_call_operand.hbm [shape: f32[16,128], index: 4, kind: output, shape index: {}]
  %s5 = sld [smem:[#allocation0]]
  $region42: #{tpu_custom_call.1} parent=0
    _
  %s7 = ssub.s32 1, %s5
  %s8 = scalar_select 0, %s7, %s5
  $region1: #{tpu_custom_call.1} parent=0
    #allocation2 [shape = 'u8[8192]{0}', space=vmem, size = 0x2000, scoped, tag = 'input window, operand 0, single buffered']
    #allocation3 [shape = 's32[1]{0}', space=sflag, size = 0x4, scoped, tag = 'scoped memory for tpu_custom_call.1']
    #allocation4 [shape = 's32[1]{0}', space=sflag, size = 0x4, scoped, tag = 'scoped memory for tpu_custom_call.1']
    #allocation5 [shape = 'u8[65536]{0}', space=vmem, size = 0x10000, scoped, tag = 'input window, operand 1, single buffered']
    #allocation6 [shape = 's32[1]{0}', space=sflag, size = 0x4, scoped, tag = 'scoped memory for tpu_custom_call.1']
    #allocation7 [shape = 'u8[65536]{0}', space=vmem, size = 0x10000, scoped, tag = 'input window, operand 3, single buffered']
    #allocation8 [shape = 'u8[8192]{0}', space=vmem, size = 0x2000, scoped, tag = 'output window, operand 0, single buffered']
    %9 = vsyncpa [#allocation3], 0
    %10 = vsyncpa [#allocation6], 0
    %11 = vsyncpa [#allocation4], 0
    // Predicated region
    $region2: #{tpu_custom_call.1} parent=1 // pred_check
      _
    $region3: #{tpu_custom_call.1} parent=1 // pred_check_branch
      %13 = sbr.rel (0) target = $region5
    $region4: #{tpu_custom_call.1} parent=1 // pred_region
      %15 = vsyncadd [#allocation3], 0
      %s16 = sshll.u32 %s0, 4
      %s17 = int_to_ptr.hbm [resolvable:$true] %s16
      %s18 = sshll.u32 [#allocation2], 4
      %s19 = int_to_ptr.vmem [resolvable:$true] %s18
      %24 = dma.hbm_to_vmem [thread:$0]  %s17, 256, %s19, [#allocation3], 128, 128, 8
    $region5: #{tpu_custom_call.1} parent=1 // pred_fallthru
      _
    // Predicated region
    $region6: #{tpu_custom_call.1} parent=1 // pred_check
      _
    $region7: #{tpu_custom_call.1} parent=1 // pred_check_branch
      %26 = sbr.rel (0) target = $region9
    $region8: #{tpu_custom_call.1} parent=1 // pred_region
      %28 = vsyncadd [#allocation6], 0
      %s29 = sshll.u32 %s1, 4
      %s30 = int_to_ptr.hbm [resolvable:$true] %s29
      %s31 = sshll.u32 [#allocation5], 4
      %s32 = int_to_ptr.vmem [resolvable:$true] %s31
      %37 = dma.hbm_to_vmem [thread:$0]  %s30, 2048, %s32, [#allocation6], 128, 128, 8
    $region9: #{tpu_custom_call.1} parent=1 // pred_fallthru
      _
    // Predicated region
    $region10: #{tpu_custom_call.1} parent=1 // pred_check
      _
    $region11: #{tpu_custom_call.1} parent=1 // pred_check_branch
      %39 = sbr.rel (0) target = $region13
    $region12: #{tpu_custom_call.1} parent=1 // pred_region
      _
    $region13: #{tpu_custom_call.1} parent=1 // pred_fallthru
      _
    // Predicated region
    $region14: #{tpu_custom_call.1} parent=1 // pred_check
      _
    $region15: #{tpu_custom_call.1} parent=1 // pred_check_branch
      %41 = sbr.rel (0) target = $region17
    $region16: #{tpu_custom_call.1} parent=1 // pred_region
      %43 = vsyncadd [#allocation6], 0
      %s44 = sshll.u32 %s3, 4
      %s45 = int_to_ptr.hbm [resolvable:$true] %s44
      %s46 = sshll.u32 [#allocation7], 4
      %s47 = int_to_ptr.vmem [resolvable:$true] %s46
      %52 = dma.hbm_to_vmem [thread:$0]  %s45, 2048, %s47, [#allocation6], 128, 128, 8
    $region17: #{tpu_custom_call.1} parent=1 // pred_fallthru
      _
    // Predicated region
    $region18: #{tpu_custom_call.1} parent=1 // pred_check
      _
    $region19: #{tpu_custom_call.1} parent=1 // pred_check_branch
      %54 = sbr.rel (0) target = $region21
    $region20: #{tpu_custom_call.1} parent=1 // pred_region
      %56 = dma.done [#allocation3], 256
    $region21: #{tpu_custom_call.1} parent=1 // pred_fallthru
      _
    // Predicated region
    $region22: #{tpu_custom_call.1} parent=1 // pred_check
      _
    $region23: #{tpu_custom_call.1} parent=1 // pred_check_branch
      %58 = sbr.rel (0) target = $region25
    $region24: #{tpu_custom_call.1} parent=1 // pred_region
      %60 = dma.done [#allocation6], 2048
    $region25: #{tpu_custom_call.1} parent=1 // pred_fallthru
      _
    // Predicated region
    $region26: #{tpu_custom_call.1} parent=1 // pred_check
      _
    $region27: #{tpu_custom_call.1} parent=1 // pred_check_branch
      %62 = sbr.rel (0) target = $region29
    $region28: #{tpu_custom_call.1} parent=1 // pred_region
      %64 = dma.done [#allocation6], 2048
    $region29: #{tpu_custom_call.1} parent=1 // pred_fallthru
      _
    %p65 = scmp.eq.s32.totalorder 0, 0
    // Predicated region
    $region30: #{tpu_custom_call.1} parent=1 // pred_check
      %p66 = pneg %p65
    $region31: #{tpu_custom_call.1} parent=1 // pred_check_branch
      %68 = sbr.rel (%p66) target = $region33
    $region32: #{tpu_custom_call.1} parent=1 // pred_region
      %69 = vst [vmem:[#allocation8] sm:$0xff] 0.0
      %70 = vst [vmem:[#allocation8 + $0x8] sm:$0xff] 0.0
    $region33: #{tpu_custom_call.1} parent=1 // pred_fallthru
      _
    %v71 = vld [vmem:[#allocation2] sm:$0xff]
    %v72 = vld [vmem:[#allocation2 + $0x8] sm:$0xff]
    %v73 = vld [vmem:[#allocation5] sm:$0xff]
    %v74 = vld [vmem:[#allocation5 + $0x8] sm:$0xff]
    %v75 = vld [vmem:[#allocation5 + $0x10] sm:$0xff]
    %v76 = vld [vmem:[#allocation5 + $0x18] sm:$0xff]
    %v77 = vld [vmem:[#allocation5 + $0x20] sm:$0xff]
    %v78 = vld [vmem:[#allocation5 + $0x28] sm:$0xff]
    %v79 = vld [vmem:[#allocation5 + $0x30] sm:$0xff]
    %v80 = vld [vmem:[#allocation5 + $0x38] sm:$0xff]
    %v81 = vld [vmem:[#allocation5 + $0x40] sm:$0xff]
    %v82 = vld [vmem:[#allocation5 + $0x48] sm:$0xff]
    %v83 = vld [vmem:[#allocation5 + $0x50] sm:$0xff]
    %v84 = vld [vmem:[#allocation5 + $0x58] sm:$0xff]
    %v85 = vld [vmem:[#allocation5 + $0x60] sm:$0xff]
    %v86 = vld [vmem:[#allocation5 + $0x68] sm:$0xff]
    %v87 = vld [vmem:[#allocation5 + $0x70] sm:$0xff]
    %v88 = vld [vmem:[#allocation5 + $0x78] sm:$0xff]
    %v89 = vld [vmem:[%s2] sm:$0x1]
    %v91 = vperm.slane %v89, 0
    %93 = vmatpush.msra.mxu0 %v88
    %94 = vmatpush.msra.mxu0 %v87
    %95 = vmatpush.msra.mxu0 %v86
    %96 = vmatpush.msra.mxu0 %v85
    %97 = vmatpush.msra.mxu0 %v84
    %98 = vmatpush.msra.mxu0 %v83
    %99 = vmatpush.msra.mxu0 %v82
    %100 = vmatpush.msra.mxu0 %v81
    %101 = vmatpush.msra.mxu0 %v80
    %102 = vmatpush.msra.mxu0 %v79
    %103 = vmatpush.msra.mxu0 %v78
    %104 = vmatpush.msra.mxu0 %v77
    %105 = vmatpush.msra.mxu0 %v76
    %106 = vmatpush.msra.mxu0 %v75
    %107 = vmatpush.msra.mxu0 %v74
    %108 = vmatpush.msra.mxu0 %v73
    %109 = vmatmul.f32.gmra.mxu0 %v71
    %v110 = vpop.f32.mrf.mxu0
    %v111 = vadd.f32 %v91, %v110
    %112 = vmatmul.f32.gmra.mxu0 %v72
    %v113 = vpop.f32.mrf.mxu0
    %v114 = vadd.f32 %v91, %v113
    %115 = vdwg.mxu0
    %v116 = vmul.f32 %v111, %v111
    %v117 = vmul.f32 %v114, %v114
    %v118 = vmul.f32 %v111, 0.5
    %v119 = vmul.f32 %v114, 0.5
    %v120 = vmul.f32 %v116, 0.035677407
    %v121 = vmul.f32 %v117, 0.035677407
    %v122 = vadd.f32 %v120, 0.7978846
    %v123 = vadd.f32 %v121, 0.7978846
    %v124 = vmul.f32 %v111, %v122
    %v125 = vmul.f32 %v114, %v123
    %v126 = vtanh.pop %v124
    %v127 = vtanh.pop %v125
    %v128 = vadd.f32 %v126, 1.0
    %v129 = vadd.f32 %v127, 1.0
    %v130 = vmul.f32 %v118, %v128
    %v131 = vmul.f32 %v119, %v129
    %v132 = vld [vmem:[#allocation8] sm:$0xff]
    %v133 = vld [vmem:[#allocation8 + $0x8] sm:$0xff]
    %v134 = vld [vmem:[#allocation7] sm:$0xff]
    %v135 = vld [vmem:[#allocation7 + $0x8] sm:$0xff]
    %v136 = vld [vmem:[#allocation7 + $0x10] sm:$0xff]
    %v137 = vld [vmem:[#allocation7 + $0x18] sm:$0xff]
    %v138 = vld [vmem:[#allocation7 + $0x20] sm:$0xff]
    %v139 = vld [vmem:[#allocation7 + $0x28] sm:$0xff]
    %v140 = vld [vmem:[#allocation7 + $0x30] sm:$0xff]
    %v141 = vld [vmem:[#allocation7 + $0x38] sm:$0xff]
    %v142 = vld [vmem:[#allocation7 + $0x40] sm:$0xff]
    %v143 = vld [vmem:[#allocation7 + $0x48] sm:$0xff]
    %v144 = vld [vmem:[#allocation7 + $0x50] sm:$0xff]
    %v145 = vld [vmem:[#allocation7 + $0x58] sm:$0xff]
    %v146 = vld [vmem:[#allocation7 + $0x60] sm:$0xff]
    %v147 = vld [vmem:[#allocation7 + $0x68] sm:$0xff]
    %v148 = vld [vmem:[#allocation7 + $0x70] sm:$0xff]
    %v149 = vld [vmem:[#allocation7 + $0x78] sm:$0xff]
    %150 = vmatpush.msra.mxu0 %v149
    %151 = vmatpush.msra.mxu0 %v148
    %152 = vmatpush.msra.mxu0 %v147
    %153 = vmatpush.msra.mxu0 %v146
    %154 = vmatpush.msra.mxu0 %v145
    %155 = vmatpush.msra.mxu0 %v144
    %156 = vmatpush.msra.mxu0 %v143
    %157 = vmatpush.msra.mxu0 %v142
    %158 = vmatpush.msra.mxu0 %v141
    %159 = vmatpush.msra.mxu0 %v140
    %160 = vmatpush.msra.mxu0 %v139
    %161 = vmatpush.msra.mxu0 %v138
    %162 = vmatpush.msra.mxu0 %v137
    %163 = vmatpush.msra.mxu0 %v136
    %164 = vmatpush.msra.mxu0 %v135
    %165 = vmatpush.msra.mxu0 %v134
    %166 = vmatmul.f32.gmra.mxu0 %v130
    %v167 = vpop.f32.mrf.mxu0
    %v168 = vadd.f32 0.0, %v167
    %169 = vmatmul.f32.gmra.mxu0 %v131
    %v170 = vpop.f32.mrf.mxu0
    %v171 = vadd.f32 0.0, %v170
    %172 = vdwg.mxu0
    %v173 = vadd.f32 %v132, %v168
    %v174 = vadd.f32 %v133, %v171
    %175 = vst [vmem:[#allocation8] sm:$0xff] %v173
    %176 = vst [vmem:[#allocation8 + $0x8] sm:$0xff] %v174
    // Predicated region
    $region34: #{tpu_custom_call.1} parent=1 // pred_check
      _
    $region35: #{tpu_custom_call.1} parent=1 // pred_check_branch
      %178 = sbr.rel (0) target = $region37
    $region36: #{tpu_custom_call.1} parent=1 // pred_region
      %180 = vsyncadd [#allocation4], 0
      %s181 = sshll.u32 [#allocation8], 4
      %s182 = int_to_ptr.vmem [resolvable:$true] %s181
      %s183 = sshll.u32 %s4, 4
      %s184 = int_to_ptr.hbm [resolvable:$true] %s183
      %189 = dma.vmem_to_hbm [thread:$0]  %s182, 256, %s184, [#allocation4], 128, 128, 8
    $region37: #{tpu_custom_call.1} parent=1 // pred_fallthru
      _
    // Predicated region
    $region38: #{tpu_custom_call.1} parent=1 // pred_check
      _
    $region39: #{tpu_custom_call.1} parent=1 // pred_check_branch
      %191 = sbr.rel (0) target = $region41
    $region40: #{tpu_custom_call.1} parent=1 // pred_region
      %193 = dma.done [#allocation4], 256
    $region41: #{tpu_custom_call.1} parent=1 // pred_fallthru
      _
    %194 = vsyncpa [#allocation3], 1
    %195 = vsyncpa [#allocation6], 1
    %196 = vsyncpa [#allocation4], 1

</llo_original>
